<compile_context>
chip_gen: v5e
topology: v5e:2x2
jax: 0.10.0
libtpu: 0.0.40
codegen_flags: <defaults>
</compile_context>

<pallas_src>
import jax
import jax.numpy as jnp
from jax import lax
from jax.experimental import pallas as pl
from jax.experimental.pallas import tpu as pltpu

_LANE = 128


def _rup(n, m=_LANE):
    return ((n + m - 1) // m) * m


def _pad_last(x, to):
    pad = to - x.shape[-1]
    if pad == 0:
        return x
    return jnp.pad(x, [(0, 0)] * (x.ndim - 1) + [(0, pad)])


def _encdec_kernel(enc_x_ref,    # (bb*Senc, Dp)  bf16
                   dec_x_ref,    # (bb*Sdec, Hp)  bf16
                   vl_ref,       # (bb, 1)        int32
                   w_enc_ref,    # (Dp, Hp)       bf16
                   b_enc_ref,    # (1, Hp)        f32
                   w_dec_ref,    # (2*Hp, Op)     bf16  == [w_dx ; w_dc]
                   b_dec_ref,    # (1, Op)        f32
                   out_ref):     # (bb*Sdec, Op)  f32
    bb = vl_ref.shape[0]
    senc = enc_x_ref.shape[0] // bb
    sdec = dec_x_ref.shape[0] // bb
    hp = dec_x_ref.shape[1]

    # ---- encoder: single flattened (bb*Senc, Dp) @ (Dp, Hp) MXU matmul ----
    enc_h = jnp.tanh(
        jnp.dot(enc_x_ref[...], w_enc_ref[...],
                preferred_element_type=jnp.float32)
        + b_enc_ref[...])                                        # (bb*Senc, Hp) f32

    # ---- init_state: masked mean over the first vl[b] encoder steps ----
    # Split of the leading (sublane) dim at a multiple of 8 -> layout-safe.
    enc_h3 = enc_h.reshape(bb, senc, hp)                         # (bb, Senc, Hp) f32
    vl = vl_ref[...]                                             # (bb, 1) int32
    step = lax.broadcasted_iota(jnp.int32, (1, senc, 1), 1)      # (1, Senc, 1)
    mask = (step < vl[:, :, None]).astype(jnp.float32)           # (bb, Senc, 1)
    denom = jnp.maximum(vl, 1).astype(jnp.float32)               # (bb, 1)
    ctx = jnp.sum(enc_h3 * mask, axis=1) / denom                 # (bb, Hp) f32

    # ---- decoder: single fused matmul  [dec_x | ctx] @ [[w_dx],[w_dc]] ----
    ctx_b = jnp.broadcast_to(ctx[:, None, :], (bb, sdec, hp))
    ctx_b = ctx_b.reshape(bb * sdec, hp).astype(dec_x_ref.dtype)  # bf16
    lhs = jnp.concatenate([dec_x_ref[...], ctx_b], axis=1)        # (bb*Sdec, 2Hp) bf16
    dec_h = (jnp.dot(lhs, w_dec_ref[...],
                     preferred_element_type=jnp.float32)
             + b_dec_ref[...])                                    # (bb*Sdec, Op) f32
    out_ref[...] = jnp.tanh(dec_h).astype(out_ref.dtype)


def encoder_decoder_forward(enc_x, dec_x, enc_valid_len, params, *, bb=None):
    """enc_x: (B, Senc, Din) f32; dec_x: (B, Sdec, H) f32;
       enc_valid_len: (B,) int.  Returns (B, Sdec, Dout) f32."""
    B, Senc, Din = enc_x.shape
    _, Sdec, H = dec_x.shape
    Dout = params["w_dx"].shape[1]

    if bb is None:
        bb = B                     # whole batch in one grid step for small B
    assert B % bb == 0, "batch block size must divide batch"
    assert bb == B or (bb % 8 == 0), "batch block must be 8-aligned when tiled"

    Dp, Hp, Op = _rup(Din), _rup(H), _rup(Dout)

    # Flatten batch into the matmul M dim (free XLA reshape in HBM), pad
    # feature dims to lane-dense 128 multiples, cast MXU operands to bf16.
    enc_x2 = _pad_last(enc_x.reshape(B * Senc, Din), Dp).astype(jnp.bfloat16)
    dec_x2 = _pad_last(dec_x.reshape(B * Sdec, H), Hp).astype(jnp.bfloat16)
    vl = enc_valid_len.astype(jnp.int32).reshape(B, 1)

    w_enc = jnp.pad(params["w_enc"],
                    ((0, Dp - Din), (0, Hp - H))).astype(jnp.bfloat16)
    b_enc = _pad_last(params["b_enc"].reshape(1, H).astype(jnp.float32), Hp)
    # Fused decoder weight: rows [0:H) <- w_dx, rows [Hp:Hp+H) <- w_dc.
    w_dec = jnp.zeros((2 * Hp, Op), jnp.float32)
    w_dec = w_dec.at[:H, :Dout].set(params["w_dx"])
    w_dec = w_dec.at[Hp:Hp + H, :Dout].set(params["w_dc"])
    w_dec = w_dec.astype(jnp.bfloat16)
    b_dec = _pad_last(params["b_dec"].reshape(1, Dout).astype(jnp.float32), Op)

    out2 = pl.pallas_call(
        _encdec_kernel,
        out_shape=jax.ShapeDtypeStruct((B * Sdec, Op), jnp.float32),
        grid=(B // bb,),
        in_specs=[
            pl.BlockSpec((bb * Senc, Dp), lambda i: (i, 0)),   # enc_x (flattened)
            pl.BlockSpec((bb * Sdec, Hp), lambda i: (i, 0)),   # dec_x (flattened)
            pl.BlockSpec((bb, 1),         lambda i: (i, 0)),   # valid_len
            pl.BlockSpec((Dp, Hp),        lambda i: (0, 0)),   # w_enc
            pl.BlockSpec((1, Hp),         lambda i: (0, 0)),   # b_enc
            pl.BlockSpec((2 * Hp, Op),    lambda i: (0, 0)),   # [w_dx ; w_dc]
            pl.BlockSpec((1, Op),         lambda i: (0, 0)),   # b_dec
        ],
        out_specs=pl.BlockSpec((bb * Sdec, Op), lambda i: (i, 0)),
        compiler_params=pltpu.CompilerParams(
            dimension_semantics=("parallel",)),
    )(enc_x2, dec_x2, vl, w_enc, b_enc, w_dec, b_dec)

    return out2[:, :Dout].reshape(B, Sdec, Dout)


def _reference_forward(enc_x, dec_x, enc_valid_len, params):
    """Pure-JAX f32 reference for correctness checking."""
    enc_h = jnp.tanh(enc_x @ params["w_enc"] + params["b_enc"])       # (B,Senc,H)
    idx = jnp.arange(enc_x.shape[1])[None, :, None]                   # (1,Senc,1)
    mask = (idx < enc_valid_len[:, None, None]).astype(jnp.float32)
    denom = jnp.maximum(enc_valid_len, 1).astype(jnp.float32)[:, None]
    ctx = jnp.sum(enc_h * mask, axis=1) / denom                       # (B,H)
    dec_h = (dec_x @ params["w_dx"]
             + (ctx @ params["w_dc"])[:, None, :] + params["b_dec"])
    return jnp.tanh(dec_h)


if __name__ == "__main__":
    # Small deterministic shapes: batch=2, enc_seq=8, dec_seq=8,
    # enc_in=32, num_hiddens=32, out_dim=32.
    B, Senc, Sdec, Din, H, Dout = 2, 8, 8, 32, 32, 32

    key = jax.random.PRNGKey(0)
    k1, k2, k3, k4, k5 = jax.random.split(key, 5)

    params = {
        "w_enc": jax.random.normal(k1, (Din, H), jnp.float32) * 0.1,
        "b_enc": jnp.zeros((1, H), jnp.float32),
        "w_dx":  jax.random.normal(k2, (H, Dout), jnp.float32) * 0.1,
        "w_dc":  jax.random.normal(k3, (H, Dout), jnp.float32) * 0.1,
        "b_dec": jnp.zeros((1, Dout), jnp.float32),
    }

    enc_x = jax.random.normal(k4, (B, Senc, Din), jnp.float32)
    dec_x = jax.random.normal(k5, (B, Sdec, H), jnp.float32)
    enc_valid_len = jnp.array([5, 8], dtype=jnp.int32)

    out = encoder_decoder_forward(enc_x, dec_x, enc_valid_len, params)
    out = jax.block_until_ready(out)

    ref = _reference_forward(enc_x, dec_x, enc_valid_len, params)
    assert out.shape == (B, Sdec, Dout)
    # bf16 MXU operands (f32 accumulation) -> loosened tolerance vs f32 reference.
    err = float(jnp.max(jnp.abs(out - ref)))
    assert jnp.allclose(out, ref, atol=5e-2, rtol=5e-2), f"max abs err {err}"

    print("KERNEL_OK")
</pallas_src>

<mosaic_0001>
module attributes {stable_mosaic.version = 11 : i64} {
  func.func @_encdec_kernel(%arg0: i32, %arg1: memref<16x128xbf16, #tpu.memory_space<vmem>>, %arg2: memref<16x128xbf16, #tpu.memory_space<vmem>>, %arg3: memref<2x1xi32, #tpu.memory_space<vmem>>, %arg4: memref<128x128xbf16, #tpu.memory_space<vmem>>, %arg5: memref<1x128xf32, #tpu.memory_space<vmem>>, %arg6: memref<256x128xbf16, #tpu.memory_space<vmem>>, %arg7: memref<1x128xf32, #tpu.memory_space<vmem>>, %arg8: memref<16x128xf32, #tpu.memory_space<vmem>>) attributes {dimension_semantics = [#tpu.dimension_semantics<parallel>], iteration_bounds = array<i64: 1>, scalar_prefetch = 0 : i64, scratch_operands = 0 : i64, tpu.core_type = #tpu.core_type<tc>, window_params = [{transform_indices = @transform_0, window_bounds = array<i64: 16, 128>}, {transform_indices = @transform_1, window_bounds = array<i64: 16, 128>}, {transform_indices = @transform_2, window_bounds = array<i64: 2, 1>}, {pipeline_mode = #tpu.pipeline_mode<synchronous>, transform_indices = @transform_3, window_bounds = array<i64: 128, 128>}, {pipeline_mode = #tpu.pipeline_mode<synchronous>, transform_indices = @transform_4, window_bounds = array<i64: 1, 128>}, {pipeline_mode = #tpu.pipeline_mode<synchronous>, transform_indices = @transform_5, window_bounds = array<i64: 256, 128>}, {pipeline_mode = #tpu.pipeline_mode<synchronous>, transform_indices = @transform_6, window_bounds = array<i64: 1, 128>}, {transform_indices = @transform_7, window_bounds = array<i64: 16, 128>}]} {
    %c0 = arith.constant 0 : index
    %c0_0 = arith.constant 0 : index
    %0 = vector.load %arg1[%c0, %c0_0] : memref<16x128xbf16, #tpu.memory_space<vmem>>, vector<16x128xbf16>
    %c0_1 = arith.constant 0 : index
    %c0_2 = arith.constant 0 : index
    %1 = vector.load %arg4[%c0_1, %c0_2] : memref<128x128xbf16, #tpu.memory_space<vmem>>, vector<128x128xbf16>
    %cst = arith.constant dense<0.000000e+00> : vector<16x128xf32>
    %2 = tpu.matmul %0, %1, %cst {dimension_numbers = #tpu.dot_dimension_numbers<[1], [0], [0], [1], [0, 0, 1, 1], [], []>} : vector<16x128xbf16>, vector<128x128xbf16>, vector<16x128xf32> -> vector<16x128xf32>
    %c0_3 = arith.constant 0 : index
    %c0_4 = arith.constant 0 : index
    %3 = vector.load %arg5[%c0_3, %c0_4] : memref<1x128xf32, #tpu.memory_space<vmem>>, vector<1x128xf32>
    %4 = vector.broadcast %3 : vector<1x128xf32> to vector<16x128xf32>
    %5 = arith.addf %2, %4 : vector<16x128xf32>
    %6 = math.tanh %5 : vector<16x128xf32>
    %7 = vector.shape_cast %6 : vector<16x128xf32> to vector<2x8x128xf32>
    %c0_5 = arith.constant 0 : index
    %c0_6 = arith.constant 0 : index
    %8 = vector.load %arg3[%c0_5, %c0_6] : memref<2x1xi32, #tpu.memory_space<vmem>>, vector<2x1xi32>
    %9 = tpu.iota {dimensions = array<i32: 1>} : vector<1x8x1xi32>
    %10 = vector.shape_cast %8 : vector<2x1xi32> to vector<2x1x1xi32>
    %11 = vector.broadcast %9 : vector<1x8x1xi32> to vector<2x8x1xi32>
    %12 = vector.broadcast %10 : vector<2x1x1xi32> to vector<2x8x1xi32>
    %13 = arith.cmpi slt, %11, %12 : vector<2x8x1xi32>
    %14 = arith.extui %13 : vector<2x8x1xi1> to vector<2x8x1xi32>
    %15 = arith.sitofp %14 : vector<2x8x1xi32> to vector<2x8x1xf32>
    %c1_i32 = arith.constant 1 : i32
    %16 = vector.broadcast %c1_i32 : i32 to vector<2x1xi32>
    %17 = arith.maxsi %8, %16 : vector<2x1xi32>
    %18 = arith.sitofp %17 : vector<2x1xi32> to vector<2x1xf32>
    %19 = vector.broadcast %15 : vector<2x8x1xf32> to vector<2x8x128xf32>
    %20 = arith.mulf %7, %19 : vector<2x8x128xf32>
    %cst_7 = arith.constant dense<0.000000e+00> : vector<2x128xf32>
    %21 = vector.multi_reduction <add>, %20, %cst_7 [1] : vector<2x8x128xf32> to vector<2x128xf32>
    %22 = vector.broadcast %18 : vector<2x1xf32> to vector<2x128xf32>
    %23 = arith.divf %21, %22 : vector<2x128xf32>
    %24 = vector.shape_cast %23 : vector<2x128xf32> to vector<2x1x128xf32>
    %25 = vector.shape_cast %24 : vector<2x1x128xf32> to vector<2x1x128xf32>
    %26 = vector.broadcast %25 : vector<2x1x128xf32> to vector<2x8x128xf32>
    %27 = vector.shape_cast %26 : vector<2x8x128xf32> to vector<16x128xf32>
    %28 = arith.truncf %27 : vector<16x128xf32> to vector<16x128xbf16>
    %c0_8 = arith.constant 0 : index
    %c0_9 = arith.constant 0 : index
    %29 = vector.load %arg2[%c0_8, %c0_9] : memref<16x128xbf16, #tpu.memory_space<vmem>>, vector<16x128xbf16>
    %30 = tpu.concatenate %29, %28 in 1 : vector<16x128xbf16>, vector<16x128xbf16> -> vector<16x256xbf16>
    %c0_10 = arith.constant 0 : index
    %c0_11 = arith.constant 0 : index
    %31 = vector.load %arg6[%c0_10, %c0_11] : memref<256x128xbf16, #tpu.memory_space<vmem>>, vector<256x128xbf16>
    %cst_12 = arith.constant dense<0.000000e+00> : vector<16x128xf32>
    %32 = tpu.matmul %30, %31, %cst_12 {dimension_numbers = #tpu.dot_dimension_numbers<[1], [0], [0], [1], [0, 0, 1, 1], [], []>} : vector<16x256xbf16>, vector<256x128xbf16>, vector<16x128xf32> -> vector<16x128xf32>
    %c0_13 = arith.constant 0 : index
    %c0_14 = arith.constant 0 : index
    %33 = vector.load %arg7[%c0_13, %c0_14] : memref<1x128xf32, #tpu.memory_space<vmem>>, vector<1x128xf32>
    %34 = vector.broadcast %33 : vector<1x128xf32> to vector<16x128xf32>
    %35 = arith.addf %32, %34 : vector<16x128xf32>
    %36 = math.tanh %35 : vector<16x128xf32>
    %c0_15 = arith.constant 0 : index
    %c0_16 = arith.constant 0 : index
    %37 = vector.load %arg8[%c0_15, %c0_16] : memref<16x128xf32, #tpu.memory_space<vmem>>, vector<16x128xf32>
    tpu.vector_store %arg8[%c0_15, %c0_16], %36 {strides = array<i32>} : memref<16x128xf32, #tpu.memory_space<vmem>>, vector<16x128xf32>,
    return
  }
  func.func @transform_0(%arg0: i32) -> (i32, i32) {
    %c0_i32 = arith.constant 0 : i32
    %c0_i32_0 = arith.constant 0 : i32
    return %arg0, %c0_i32 : i32, i32
  }
  func.func @transform_1(%arg0: i32) -> (i32, i32) {
    %c0_i32 = arith.constant 0 : i32
    %c0_i32_0 = arith.constant 0 : i32
    return %arg0, %c0_i32 : i32, i32
  }
  func.func @transform_2(%arg0: i32) -> (i32, i32) {
    %c0_i32 = arith.constant 0 : i32
    %c0_i32_0 = arith.constant 0 : i32
    return %arg0, %c0_i32 : i32, i32
  }
  func.func @transform_3(%arg0: i32) -> (i32, i32) {
    %c0_i32 = arith.constant 0 : i32
    %c0_i32_0 = arith.constant 0 : i32
    %c0_i32_1 = arith.constant 0 : i32
    return %c0_i32, %c0_i32_0 : i32, i32
  }
  func.func @transform_4(%arg0: i32) -> (i32, i32) {
    %c0_i32 = arith.constant 0 : i32
    %c0_i32_0 = arith.constant 0 : i32
    %c0_i32_1 = arith.constant 0 : i32
    return %c0_i32, %c0_i32_0 : i32, i32
  }
  func.func @transform_5(%arg0: i32) -> (i32, i32) {
    %c0_i32 = arith.constant 0 : i32
    %c0_i32_0 = arith.constant 0 : i32
    %c0_i32_1 = arith.constant 0 : i32
    return %c0_i32, %c0_i32_0 : i32, i32
  }
  func.func @transform_6(%arg0: i32) -> (i32, i32) {
    %c0_i32 = arith.constant 0 : i32
    %c0_i32_0 = arith.constant 0 : i32
    %c0_i32_1 = arith.constant 0 : i32
    return %c0_i32, %c0_i32_0 : i32, i32
  }
  func.func @transform_7(%arg0: i32) -> (i32, i32) {
    %c0_i32 = arith.constant 0 : i32
    %c0_i32_0 = arith.constant 0 : i32
    return %arg0, %c0_i32 : i32, i32
  }
}

</mosaic_0001>

<llo_original>
// kernel: tpu_custom_call.1
$region0: #{tpu_custom_call.1}
  #allocation0 [shape = 'u32[]', space=smem, size = 0x4, offset = 0x4, fixed_abs, tag = 'smem constant byte address 0x4 - core index']
  #allocation1 [shape = 'u32[72,128]{1,0:T(1,128)}', space=vmem, size = 0x9000, scoped, tag = 'internal scratch']
  %s0 = inlined_call_operand.hbm [shape: bf16[16,128], index: 0, kind: input, shape index: {}]
  %s1 = inlined_call_operand.hbm [shape: bf16[16,128], index: 1, kind: input, shape index: {}]
  %s2 = inlined_call_operand.vmem [shape: s32[2,1], index: 2, kind: input, shape index: {}]
  %s3 = inlined_call_operand.hbm [shape: bf16[128,128], index: 3, kind: input, shape index: {}]
  %s4 = inlined_call_operand.vmem [shape: f32[1,128], index: 4, kind: input, shape index: {}]
  %s5 = inlined_call_operand.hbm [shape: bf16[256,128], index: 5, kind: input, shape index: {}]
  %s6 = inlined_call_operand.vmem [shape: f32[1,128], index: 6, kind: input, shape index: {}]
  %s7 = inlined_call_operand.hbm [shape: f32[16,128], index: 7, kind: output, shape index: {}]
  %s8 = sld [smem:[#allocation0]]
  $region54: #{tpu_custom_call.1} parent=0
    _
  %s10 = ssub.s32 1, %s8
  %s11 = scalar_select 0, %s10, %s8
  $region1: #{tpu_custom_call.1} parent=0
    #allocation2 [shape = 'u8[4096]{0}', space=vmem, size = 0x1000, scoped, tag = 'input window, operand 0, single buffered']
    #allocation3 [shape = 's32[1]{0}', space=sflag, size = 0x4, scoped, tag = 'scoped memory for tpu_custom_call.1']
    #allocation4 [shape = 's32[1]{0}', space=sflag, size = 0x4, scoped, tag = 'scoped memory for tpu_custom_call.1']
    #allocation5 [shape = 'u8[4096]{0}', space=vmem, size = 0x1000, scoped, tag = 'input window, operand 1, single buffered']
    #allocation6 [shape = 's32[1]{0}', space=sflag, size = 0x4, scoped, tag = 'scoped memory for tpu_custom_call.1']
    #allocation7 [shape = 'u8[32768]{0}', space=vmem, size = 0x8000, scoped, tag = 'input window, operand 3, single buffered']
    #allocation8 [shape = 'u8[65536]{0}', space=vmem, size = 0x10000, scoped, tag = 'input window, operand 5, single buffered']
    #allocation9 [shape = 's32[1]{0}', space=sflag, size = 0x4, scoped, tag = 'scoped memory for tpu_custom_call.1']
    #allocation10 [shape = 'u8[8192]{0}', space=vmem, size = 0x2000, scoped, tag = 'output window, operand 0, single buffered']
    %12 = vsyncpa [#allocation3], 0
    %13 = vsyncpa [#allocation6], 0
    %14 = vsyncpa [#allocation9], 0
    %15 = vsyncpa [#allocation4], 0
    // Predicated region
    $region2: #{tpu_custom_call.1} parent=1 // pred_check
      _
    $region3: #{tpu_custom_call.1} parent=1 // pred_check_branch
      %17 = sbr.rel (0) target = $region5
    $region4: #{tpu_custom_call.1} parent=1 // pred_region
      %19 = vsyncadd [#allocation3], 0
      %s20 = sshll.u32 %s0, 4
      %s21 = int_to_ptr.hbm [resolvable:$true] %s20
      %s22 = sshll.u32 [#allocation2], 4
      %s23 = int_to_ptr.vmem [resolvable:$true] %s22
      %28 = dma.hbm_to_vmem [thread:$0]  %s21, 128, %s23, [#allocation3], 64, 64, 4
    $region5: #{tpu_custom_call.1} parent=1 // pred_fallthru
      _
    // Predicated region
    $region6: #{tpu_custom_call.1} parent=1 // pred_check
      _
    $region7: #{tpu_custom_call.1} parent=1 // pred_check_branch
      %30 = sbr.rel (0) target = $region9
    $region8: #{tpu_custom_call.1} parent=1 // pred_region
      %32 = vsyncadd [#allocation6], 0
      %s33 = sshll.u32 %s1, 4
      %s34 = int_to_ptr.hbm [resolvable:$true] %s33
      %s35 = sshll.u32 [#allocation5], 4
      %s36 = int_to_ptr.vmem [resolvable:$true] %s35
      %41 = dma.hbm_to_vmem [thread:$0]  %s34, 128, %s36, [#allocation6], 64, 64, 4
    $region9: #{tpu_custom_call.1} parent=1 // pred_fallthru
      _
    // Predicated region
    $region10: #{tpu_custom_call.1} parent=1 // pred_check
      _
    $region11: #{tpu_custom_call.1} parent=1 // pred_check_branch
      %43 = sbr.rel (0) target = $region13
    $region12: #{tpu_custom_call.1} parent=1 // pred_region
      _
    $region13: #{tpu_custom_call.1} parent=1 // pred_fallthru
      _
    // Predicated region
    $region14: #{tpu_custom_call.1} parent=1 // pred_check
      _
    $region15: #{tpu_custom_call.1} parent=1 // pred_check_branch
      %45 = sbr.rel (0) target = $region17
    $region16: #{tpu_custom_call.1} parent=1 // pred_region
      %47 = vsyncadd [#allocation6], 0
      %s48 = sshll.u32 %s3, 4
      %s49 = int_to_ptr.hbm [resolvable:$true] %s48
      %s50 = sshll.u32 [#allocation7], 4
      %s51 = int_to_ptr.vmem [resolvable:$true] %s50
      %56 = dma.hbm_to_vmem [thread:$0]  %s49, 1024, %s51, [#allocation6], 64, 64, 4
    $region17: #{tpu_custom_call.1} parent=1 // pred_fallthru
      _
    // Predicated region
    $region18: #{tpu_custom_call.1} parent=1 // pred_check
      _
    $region19: #{tpu_custom_call.1} parent=1 // pred_check_branch
      %58 = sbr.rel (0) target = $region21
    $region20: #{tpu_custom_call.1} parent=1 // pred_region
      _
    $region21: #{tpu_custom_call.1} parent=1 // pred_fallthru
      _
    // Predicated region
    $region22: #{tpu_custom_call.1} parent=1 // pred_check
      _
    $region23: #{tpu_custom_call.1} parent=1 // pred_check_branch
      %60 = sbr.rel (0) target = $region25
    $region24: #{tpu_custom_call.1} parent=1 // pred_region
      %62 = vsyncadd [#allocation9], 0
      %s63 = sshll.u32 %s5, 4
      %s64 = int_to_ptr.hbm [resolvable:$true] %s63
      %s65 = sshll.u32 [#allocation8], 4
      %s66 = int_to_ptr.vmem [resolvable:$true] %s65
      %71 = dma.hbm_to_vmem [thread:$0]  %s64, 2048, %s66, [#allocation9], 64, 64, 4
    $region25: #{tpu_custom_call.1} parent=1 // pred_fallthru
      _
    // Predicated region
    $region26: #{tpu_custom_call.1} parent=1 // pred_check
      _
    $region27: #{tpu_custom_call.1} parent=1 // pred_check_branch
      %73 = sbr.rel (0) target = $region29
    $region28: #{tpu_custom_call.1} parent=1 // pred_region
      _
    $region29: #{tpu_custom_call.1} parent=1 // pred_fallthru
      _
    // Predicated region
    $region30: #{tpu_custom_call.1} parent=1 // pred_check
      _
    $region31: #{tpu_custom_call.1} parent=1 // pred_check_branch
      %75 = sbr.rel (0) target = $region33
    $region32: #{tpu_custom_call.1} parent=1 // pred_region
      %77 = dma.done [#allocation3], 128
    $region33: #{tpu_custom_call.1} parent=1 // pred_fallthru
      _
    // Predicated region
    $region34: #{tpu_custom_call.1} parent=1 // pred_check
      _
    $region35: #{tpu_custom_call.1} parent=1 // pred_check_branch
      %79 = sbr.rel (0) target = $region37
    $region36: #{tpu_custom_call.1} parent=1 // pred_region
      %81 = dma.done [#allocation6], 128
    $region37: #{tpu_custom_call.1} parent=1 // pred_fallthru
      _
    // Predicated region
    $region38: #{tpu_custom_call.1} parent=1 // pred_check
      _
    $region39: #{tpu_custom_call.1} parent=1 // pred_check_branch
      %83 = sbr.rel (0) target = $region41
    $region40: #{tpu_custom_call.1} parent=1 // pred_region
      %85 = dma.done [#allocation6], 1024
    $region41: #{tpu_custom_call.1} parent=1 // pred_fallthru
      _
    // Predicated region
    $region42: #{tpu_custom_call.1} parent=1 // pred_check
      _
    $region43: #{tpu_custom_call.1} parent=1 // pred_check_branch
      %87 = sbr.rel (0) target = $region45
    $region44: #{tpu_custom_call.1} parent=1 // pred_region
      %89 = dma.done [#allocation9], 2048
    $region45: #{tpu_custom_call.1} parent=1 // pred_fallthru
      _
    %v90 = vld [vmem:[#allocation2] sm:$0xf]
    %v91 = vld [vmem:[#allocation2 + $0x4] sm:$0xf]
    %v92 = vld [vmem:[#allocation7] sm:$0xf]
    %v93 = vld [vmem:[#allocation7 + $0x4] sm:$0xf]
    %v94 = vld [vmem:[#allocation7 + $0x8] sm:$0xf]
    %v95 = vld [vmem:[#allocation7 + $0xc] sm:$0xf]
    %v96 = vld [vmem:[#allocation7 + $0x10] sm:$0xf]
    %v97 = vld [vmem:[#allocation7 + $0x14] sm:$0xf]
    %v98 = vld [vmem:[#allocation7 + $0x18] sm:$0xf]
    %v99 = vld [vmem:[#allocation7 + $0x1c] sm:$0xf]
    %v100 = vld [vmem:[#allocation7 + $0x20] sm:$0xf]
    %v101 = vld [vmem:[#allocation7 + $0x24] sm:$0xf]
    %v102 = vld [vmem:[#allocation7 + $0x28] sm:$0xf]
    %v103 = vld [vmem:[#allocation7 + $0x2c] sm:$0xf]
    %v104 = vld [vmem:[#allocation7 + $0x30] sm:$0xf]
    %v105 = vld [vmem:[#allocation7 + $0x34] sm:$0xf]
    %v106 = vld [vmem:[#allocation7 + $0x38] sm:$0xf]
    %v107 = vld [vmem:[#allocation7 + $0x3c] sm:$0xf]
    %v108 = vld [vmem:[%s4] sm:$0x1]
    %v110 = vperm.slane %v108, 0
    %v114 = vunpack.c.l.b16 %v90
    %v115 = vunpack.c.l.b16 %v91
    %v116 = vpack.c.b16 %v115, %v114
    %v134 = vunpack.c.l.b16 %v92
    %v135 = vunpack.c.l.b16 %v93
    %v136 = vunpack.c.l.b16 %v94
    %v137 = vunpack.c.l.b16 %v95
    %v138 = vunpack.c.l.b16 %v96
    %v139 = vunpack.c.l.b16 %v97
    %v140 = vunpack.c.l.b16 %v98
    %v141 = vunpack.c.l.b16 %v99
    %v142 = vunpack.c.l.b16 %v100
    %v143 = vunpack.c.l.b16 %v101
    %v144 = vunpack.c.l.b16 %v102
    %v145 = vunpack.c.l.b16 %v103
    %v146 = vunpack.c.l.b16 %v104
    %v147 = vunpack.c.l.b16 %v105
    %v148 = vunpack.c.l.b16 %v106
    %v149 = vunpack.c.l.b16 %v107
    %v150 = vpack.c.b16 %v135, %v134
    %v151 = vpack.c.b16 %v137, %v136
    %v152 = vpack.c.b16 %v139, %v138
    %v153 = vpack.c.b16 %v141, %v140
    %v154 = vpack.c.b16 %v143, %v142
    %v155 = vpack.c.b16 %v145, %v144
    %v156 = vpack.c.b16 %v147, %v146
    %v157 = vpack.c.b16 %v149, %v148
    %166 = vmatpush.bf16.msra.mxu0 %v157
    %167 = vmatpush.bf16.msra.mxu0 %v156
    %168 = vmatpush.bf16.msra.mxu0 %v155
    %169 = vmatpush.bf16.msra.mxu0 %v154
    %170 = vmatpush.bf16.msra.mxu0 %v153
    %171 = vmatpush.bf16.msra.mxu0 %v152
    %172 = vmatpush.bf16.msra.mxu0 %v151
    %173 = vmatpush.bf16.msra.mxu0 %v150
    %174 = vmatmul.bf16.gmra.mxu0 %v116
    %v175 = vpop.f32.mrf.mxu0
    %v176 = vadd.f32 %v110, %v175
    %v177 = vpop.f32.mrf.mxu0
    %v178 = vadd.f32 %v110, %v177
    %179 = vdwg.mxu0
    %v180 = vtanh.pop %v176
    %v181 = vtanh.pop %v178
    %v182 = vld [vmem:[%s2] sm:$0x3]
    %v183 = vlaneseq
    %v184 = vshrl.u32 %v183, 7
    %v185 = vrot.slane %v182, 1
    %v186 = vperm.slane %v182, 0
    %v187 = vperm.slane %v185, 0
    %vm188 = vcmp.lt.s32.totalorder %v184, %v186
    %vm189 = vcmp.lt.s32.totalorder %v184, %v187
    %v190 = vsel %vm188, 1, 0
    %v191 = vsel %vm189, 1, 0
    %v192 = vcvt.s32.f32 %v190
    %v193 = vcvt.s32.f32 %v191
    %vm194 = vcmp.gt.s32.totalorder %v182, 1
    %v195 = vsel %vm194, %v182, 1
    %v196 = vcvt.s32.f32 %v195
    %198 = vset.pattern.permute.xlu0 0
    %199 = vperm.xlu0 %198, %v192
    %v200 = vpop.permute.xlu0 %199
    %203 = vset.pattern.permute.xlu0 0
    %204 = vperm.xlu0 %203, %v193
    %v205 = vpop.permute.xlu0 %204
    %v207 = vmul.f32 %v180, %v200
    %v208 = vmul.f32 %v181, %v205
    %v209 = vrot.slane %v207, 4
    %v210 = vadd.f32 %v207, %v209
    %v211 = vrot.slane %v210, 2
    %v212 = vadd.f32 %v210, %v211
    %v213 = vrot.slane %v212, 1
    %v214 = vadd.f32 %v212, %v213
    %v215 = vrot.slane %v208, 4
    %v216 = vadd.f32 %v208, %v215
    %v217 = vrot.slane %v216, 2
    %v218 = vadd.f32 %v216, %v217
    %v219 = vrot.slane %v218, 1
    %v220 = vadd.f32 %v218, %v219
    %222 = vset.pattern.permute.xlu0 0
    %223 = vperm.xlu0 %222, %v196
    %v224 = vpop.permute.xlu0 %223
    %v225 = vrot.slane %v224, 1
    %v228 = vrcp.pop %v224
    %v229 = vmul.f32 %v224, %v228
    %v230 = vsub.f32 1.0, %v229
    %v231 = vmul.f32 %v228, %v230
    %v232 = vadd.f32 %v228, %v231
    %vm233 = vweird.f32 %v224
    %vm234 = vweird.f32 %v228
    %vm235 = vmor %vm233, %vm234
    %v236 = vsel %vm235, %v228, %v232
    %v237 = vand.u32 2147483647, %v224
    %vm238 = vcmp.eq.f32.partialorder %v237, 8.507059e+37
    %v239 = vand.u32 %v224, 2147483648
    %v240 = vor.u32 1.1754944e-38, %v239
    %v241 = vsel %vm238, %v240, %v236
    %v242 = vmul.f32 %v214, %v241
    %v243 = vrcp.pop %v225
    %v244 = vmul.f32 %v225, %v243
    %v245 = vsub.f32 1.0, %v244
    %v246 = vmul.f32 %v243, %v245
    %v247 = vadd.f32 %v243, %v246
    %vm248 = vweird.f32 %v225
    %vm249 = vweird.f32 %v243
    %vm250 = vmor %vm248, %vm249
    %v251 = vsel %vm250, %v243, %v247
    %v252 = vand.u32 2147483647, %v225
    %vm253 = vcmp.eq.f32.partialorder %v252, 8.507059e+37
    %v254 = vand.u32 %v225, 2147483648
    %v255 = vor.u32 1.1754944e-38, %v254
    %v256 = vsel %vm253, %v255, %v251
    %v257 = vmul.f32 %v220, %v256
    %v258 = vperm.slane %v242, 0
    %v259 = vperm.slane %v257, 0
    %v260 = vpack.c.bf16 %v258, %v258
    %v261 = vpack.c.bf16 %v259, %v259
    %v262 = vld [vmem:[#allocation5] sm:$0xf]
    %v263 = vld [vmem:[#allocation5 + $0x4] sm:$0xf]
    %v266 = vunpack.c.l.b16 %v262
    %v267 = vunpack.c.l.b16 %v263
    %v268 = vpack.c.b16 %v267, %v266
    %v272 = vunpack.c.l.b16 %v260
    %v273 = vunpack.c.l.b16 %v261
    %v274 = vpack.c.b16 %v273, %v272
    %v276 = vld [vmem:[#allocation8] sm:$0xf]
    %v277 = vld [vmem:[#allocation8 + $0x4] sm:$0xf]
    %v278 = vld [vmem:[#allocation8 + $0x8] sm:$0xf]
    %v279 = vld [vmem:[#allocation8 + $0xc] sm:$0xf]
    %v280 = vld [vmem:[#allocation8 + $0x10] sm:$0xf]
    %v281 = vld [vmem:[#allocation8 + $0x14] sm:$0xf]
    %v282 = vld [vmem:[#allocation8 + $0x18] sm:$0xf]
    %v283 = vld [vmem:[#allocation8 + $0x1c] sm:$0xf]
    %v284 = vld [vmem:[#allocation8 + $0x20] sm:$0xf]
    %v285 = vld [vmem:[#allocation8 + $0x24] sm:$0xf]
    %v286 = vld [vmem:[#allocation8 + $0x28] sm:$0xf]
    %v287 = vld [vmem:[#allocation8 + $0x2c] sm:$0xf]
    %v288 = vld [vmem:[#allocation8 + $0x30] sm:$0xf]
    %v289 = vld [vmem:[#allocation8 + $0x34] sm:$0xf]
    %v290 = vld [vmem:[#allocation8 + $0x38] sm:$0xf]
    %v291 = vld [vmem:[#allocation8 + $0x3c] sm:$0xf]
    %v292 = vld [vmem:[#allocation8 + $0x40] sm:$0xf]
    %v293 = vld [vmem:[#allocation8 + $0x44] sm:$0xf]
    %v294 = vld [vmem:[#allocation8 + $0x48] sm:$0xf]
    %v295 = vld [vmem:[#allocation8 + $0x4c] sm:$0xf]
    %v296 = vld [vmem:[#allocation8 + $0x50] sm:$0xf]
    %v297 = vld [vmem:[#allocation8 + $0x54] sm:$0xf]
    %v298 = vld [vmem:[#allocation8 + $0x58] sm:$0xf]
    %v299 = vld [vmem:[#allocation8 + $0x5c] sm:$0xf]
    %v300 = vld [vmem:[#allocation8 + $0x60] sm:$0xf]
    %v301 = vld [vmem:[#allocation8 + $0x64] sm:$0xf]
    %v302 = vld [vmem:[#allocation8 + $0x68] sm:$0xf]
    %v303 = vld [vmem:[#allocation8 + $0x6c] sm:$0xf]
    %v304 = vld [vmem:[#allocation8 + $0x70] sm:$0xf]
    %v305 = vld [vmem:[#allocation8 + $0x74] sm:$0xf]
    %v306 = vld [vmem:[#allocation8 + $0x78] sm:$0xf]
    %v307 = vld [vmem:[#allocation8 + $0x7c] sm:$0xf]
    %v308 = vld [vmem:[%s6] sm:$0x1]
    %v310 = vperm.slane %v308, 0
    %v344 = vunpack.c.l.b16 %v276
    %v345 = vunpack.c.l.b16 %v277
    %v346 = vunpack.c.l.b16 %v278
    %v347 = vunpack.c.l.b16 %v279
    %v348 = vunpack.c.l.b16 %v280
    %v349 = vunpack.c.l.b16 %v281
    %v350 = vunpack.c.l.b16 %v282
    %v351 = vunpack.c.l.b16 %v283
    %v352 = vunpack.c.l.b16 %v284
    %v353 = vunpack.c.l.b16 %v285
    %v354 = vunpack.c.l.b16 %v286
    %v355 = vunpack.c.l.b16 %v287
    %v356 = vunpack.c.l.b16 %v288
    %v357 = vunpack.c.l.b16 %v289
    %v358 = vunpack.c.l.b16 %v290
    %v359 = vunpack.c.l.b16 %v291
    %v360 = vunpack.c.l.b16 %v292
    %v361 = vunpack.c.l.b16 %v293
    %v362 = vunpack.c.l.b16 %v294
    %v363 = vunpack.c.l.b16 %v295
    %v364 = vunpack.c.l.b16 %v296
    %v365 = vunpack.c.l.b16 %v297
    %v366 = vunpack.c.l.b16 %v298
    %v367 = vunpack.c.l.b16 %v299
    %v368 = vunpack.c.l.b16 %v300
    %v369 = vunpack.c.l.b16 %v301
    %v370 = vunpack.c.l.b16 %v302
    %v371 = vunpack.c.l.b16 %v303
    %v372 = vunpack.c.l.b16 %v304
    %v373 = vunpack.c.l.b16 %v305
    %v374 = vunpack.c.l.b16 %v306
    %v375 = vunpack.c.l.b16 %v307
    %v376 = vpack.c.b16 %v345, %v344
    %v377 = vpack.c.b16 %v347, %v346
    %v378 = vpack.c.b16 %v349, %v348
    %v379 = vpack.c.b16 %v351, %v350
    %v380 = vpack.c.b16 %v353, %v352
    %v381 = vpack.c.b16 %v355, %v354
    %v382 = vpack.c.b16 %v357, %v356
    %v383 = vpack.c.b16 %v359, %v358
    %v384 = vpack.c.b16 %v361, %v360
    %v385 = vpack.c.b16 %v363, %v362
    %v386 = vpack.c.b16 %v365, %v364
    %v387 = vpack.c.b16 %v367, %v366
    %v388 = vpack.c.b16 %v369, %v368
    %v389 = vpack.c.b16 %v371, %v370
    %v390 = vpack.c.b16 %v373, %v372
    %v391 = vpack.c.b16 %v375, %v374
    %408 = vmatpush.bf16.msra.mxu0 %v383
    %409 = vmatpush.bf16.msra.mxu0 %v382
    %410 = vmatpush.bf16.msra.mxu0 %v381
    %411 = vmatpush.bf16.msra.mxu0 %v380
    %412 = vmatpush.bf16.msra.mxu0 %v379
    %413 = vmatpush.bf16.msra.mxu0 %v378
    %414 = vmatpush.bf16.msra.mxu0 %v377
    %415 = vmatpush.bf16.msra.mxu0 %v376
    %416 = vmatmul.bf16.gmra.mxu0 %v268
    %v417 = vpop.f32.mrf.mxu0
    %v418 = vadd.f32 %v310, %v417
    %v419 = vpop.f32.mrf.mxu0
    %v420 = vadd.f32 %v310, %v419
    %421 = vdwg.mxu0
    %422 = vmatpush.bf16.msra.mxu0 %v391
    %423 = vmatpush.bf16.msra.mxu0 %v390
    %424 = vmatpush.bf16.msra.mxu0 %v389
    %425 = vmatpush.bf16.msra.mxu0 %v388
    %426 = vmatpush.bf16.msra.mxu0 %v387
    %427 = vmatpush.bf16.msra.mxu0 %v386
    %428 = vmatpush.bf16.msra.mxu0 %v385
    %429 = vmatpush.bf16.msra.mxu0 %v384
    %430 = vmatmul.bf16.gmra.mxu0 %v274
    %v431 = vpop.f32.mrf.mxu0
    %v432 = vadd.f32 %v418, %v431
    %v433 = vpop.f32.mrf.mxu0
    %v434 = vadd.f32 %v420, %v433
    %435 = vdwg.mxu0
    %v436 = vtanh.pop %v432
    %v437 = vtanh.pop %v434
    %438 = vst [vmem:[#allocation10] sm:$0xff] %v436
    %439 = vst [vmem:[#allocation10 + $0x8] sm:$0xff] %v437
    // Predicated region
    $region46: #{tpu_custom_call.1} parent=1 // pred_check
      _
    $region47: #{tpu_custom_call.1} parent=1 // pred_check_branch
      %441 = sbr.rel (0) target = $region49
    $region48: #{tpu_custom_call.1} parent=1 // pred_region
      %443 = vsyncadd [#allocation4], 0
      %s444 = sshll.u32 [#allocation10], 4
      %s445 = int_to_ptr.vmem [resolvable:$true] %s444
      %s446 = sshll.u32 %s7, 4
      %s447 = int_to_ptr.hbm [resolvable:$true] %s446
      %452 = dma.vmem_to_hbm [thread:$0]  %s445, 256, %s447, [#allocation4], 128, 128, 8
    $region49: #{tpu_custom_call.1} parent=1 // pred_fallthru
      _
    // Predicated region
    $region50: #{tpu_custom_call.1} parent=1 // pred_check
      _
    $region51: #{tpu_custom_call.1} parent=1 // pred_check_branch
      %454 = sbr.rel (0) target = $region53
    $region52: #{tpu_custom_call.1} parent=1 // pred_region
      %456 = dma.done [#allocation4], 256
    $region53: #{tpu_custom_call.1} parent=1 // pred_fallthru
      _
    %457 = vsyncpa [#allocation3], 1
    %458 = vsyncpa [#allocation6], 1
    %459 = vsyncpa [#allocation9], 1
    %460 = vsyncpa [#allocation4], 1

</llo_original>
